<compile_context>
chip_gen: v6e
topology: v6e:2x2x1
jax: 0.10.0
libtpu: 0.0.40
codegen_flags: <defaults>
</compile_context>

<pallas_src>
import numpy as np
import jax
import jax.numpy as jnp
from jax.experimental import pallas as pl
from jax.experimental.pallas import tpu as pltpu


_MAX_B_TILE = 256  # rows of the (B, G) operand per grid step (MXU M dim)


def _round_up(a, m):
    return (a + m - 1) // m * m


def _pick_p_tile(P, G):
    """Output-column (lane) tile size, sized per TPU generation's VMEM."""
    try:
        vmem = pltpu.get_tpu_info().vmem_capacity_bytes
    except Exception:  # be robust if the query is unavailable
        vmem = 64 << 20
    # v5e/v6e (128 MiB VMEM) get ~2x larger tiles than v7x (64 MiB per TC).
    p_cap = 2048 if vmem >= (96 << 20) else 1024
    p_pad0 = _round_up(P, 128)
    p_t = 128
    for cand in (2048, 1024, 512, 256, 128):
        if cand <= p_cap and cand <= p_pad0:
            p_t = cand
            break

    # Keep the double-buffered working set comfortably inside the default
    # scoped-VMEM limit (16 MiB v5e / 32 MiB v6e+v7x), assuming the largest
    # B tile:  2 * (b*G*4 + G*p*2 + b*p*4) bytes.
    budget = min(vmem // 4, 12 << 20)

    def ws(p):
        b = _MAX_B_TILE
        return 2 * (b * G * 4 + G * p * 2 + b * p * 4)

    while p_t > 128 and ws(p_t) > budget:
        p_t //= 2
    return p_t


def _gather_matmul_kernel(x_ref, onehot_ref, out_ref):
    """One (B_tile, P_tile) output block: exact one-hot gather on the MXU.

    x_ref:      (B_tile, G)      f32, already softand/softor-chain-transformed
    onehot_ref: (G, P_tile)      bf16 exact 0/1 selection matrix (weight-stationary)
    out_ref:    (B_tile, P_tile) f32
    """
    x = x_ref[...]
    # Exact 3-plane bf16 split (x == hi + mid + lo exactly for f32), so three
    # single-pass bf16 MXU dots with f32 accumulation reproduce the f32
    # gather bit-exactly (each onehot column selects exactly one value).
    hi = x.astype(jnp.bfloat16)
    r1 = x - hi.astype(jnp.float32)
    mid = r1.astype(jnp.bfloat16)
    lo = (r1 - mid.astype(jnp.float32)).astype(jnp.bfloat16)

    w = onehot_ref[...]
    acc = jnp.dot(hi, w, preferred_element_type=jnp.float32)
    acc = acc + jnp.dot(mid, w, preferred_element_type=jnp.float32)
    acc = acc + jnp.dot(lo, w, preferred_element_type=jnp.float32)
    out_ref[...] = acc


def make_area_function(I_i, num_atoms, gamma=0.001):
    """Pallas equivalent of AreaFunction(I_i, gamma).

    Precomputes the (G, P_pad) selection matrix and the used-atom mask ONCE
    (I_i is a model parameter) and returns forward(x).
    """
    I_i = np.asarray(I_i)
    C, S, L = int(I_i.shape[1]), int(I_i.shape[-2]), int(I_i.shape[-1])
    G = int(num_atoms)
    P = C * S * L
    inv_gamma = 1.0 / gamma  # matches PyTorch's python-float (1 / gamma)

    idx = I_i.reshape(-1).astype(np.int64)
    if idx.size == 0 or idx.min() < 0 or idx.max() >= G:
        raise ValueError("I_i must hold atom ids in [0, num_atoms) "
                         "(torch.gather would raise on out-of-range indices)")

    p_t = _pick_p_tile(P, G)
    P_pad = _round_up(P, p_t)

    # Hoisted onehot: (G, P_pad), exact 0/1 in bf16. Padding columns select
    # atom 0; their content is irrelevant because the global min/max are
    # computed input-side, and padded output columns are sliced off.
    idx_pad = np.concatenate([idx, np.zeros(P_pad - P, dtype=np.int64)])
    onehot = jnp.asarray(
        idx_pad[None, :] == np.arange(G, dtype=np.int64)[:, None],
        dtype=jnp.bfloat16)

    # Which atoms actually appear in I_i (for the hoisted global min/max).
    used_np = np.zeros((G,), dtype=bool)
    used_np[idx] = True
    used = jnp.asarray(used_np)

    def forward(x):
        B, G_in, W, H = x.shape
        assert G_in == G, "x channel dim must equal num_atoms"
        assert (W, H) == (1, 1), \
            "torch.gather in AreaFunction is only valid for 1x1 spatial dims"
        x2 = x.reshape(B, G).astype(jnp.float32)

        # ---- hoisted softand/softor global reductions (exact) -------------
        # The post-gather chain is elementwise monotone and the gather only
        # replicates x values, so min/max over the gathered (B, P) tensor ==
        # the chain applied to min/max over the x entries that I_i uses.
        xmin = jnp.min(jnp.where(used, x2, jnp.inf))
        xmax = jnp.max(jnp.where(used, x2, -jnp.inf))
        prod_min = (-gamma) * ((-xmin) * inv_gamma)
        shift = jnp.where(prod_min < 0.0, -prod_min, 0.0)
        c_max = gamma * ((((-gamma) * ((-xmax) * inv_gamma)) + shift) * inv_gamma)

        # ---- pre-apply the per-element chain on (B, G) ---------------------
        # O(B*G) wrapper work replaces the O(B*P) kernel epilogue; the kernel
        # becomes a pure carry-free streaming matmul ("parallel" everywhere).
        prod = (-gamma) * ((-x2) * inv_gamma)        # softand (size-1 reduce dim)
        c = gamma * ((prod + shift) * inv_gamma)     # softor  (size-1 reduce dim)
        x_t = jnp.where(c_max > 1.0, c / c_max, c)   # same division as torch

        # ---- tiled, weight-stationary one-hot gather on the MXU ------------
        b_t = B if B <= _MAX_B_TILE else _MAX_B_TILE
        B_pad = _round_up(B, b_t)
        if B_pad > B:
            x_t = jnp.pad(x_t, ((0, B_pad - B), (0, 0)))

        out = pl.pallas_call(
            _gather_matmul_kernel,
            out_shape=jax.ShapeDtypeStruct((B_pad, P_pad), jnp.float32),
            # P outer, B innermost: the (G, p_t) onehot block stays resident
            # in VMEM across the whole B sweep (weight-stationary).
            grid=(P_pad // p_t, B_pad // b_t),
            in_specs=[
                pl.BlockSpec((b_t, G), lambda p, b: (b, 0)),
                pl.BlockSpec((G, p_t), lambda p, b: (0, p)),
            ],
            out_specs=pl.BlockSpec((b_t, p_t), lambda p, b: (b, p)),
            compiler_params=pltpu.CompilerParams(
                dimension_semantics=("parallel", "parallel")),
            cost_estimate=pl.CostEstimate(
                flops=2 * 3 * B_pad * G * P_pad,
                transcendentals=0,
                bytes_accessed=4 * B_pad * G + 2 * G * P_pad
                + 4 * B_pad * P_pad),
        )(x_t, onehot)

        return out[:B, :P].reshape(B, C, S, L)

    return forward


def area_function(x, I_i, gamma=0.001):
    """Convenience wrapper; prefer make_area_function(...) at model init so
    the onehot construction is hoisted out of the per-call path."""
    return make_area_function(I_i, num_atoms=x.shape[1], gamma=gamma)(x)


def area_function_ref(x, I_i, gamma=0.001):
    """Pure-JAX reference mirroring the PyTorch forward (W == H == 1)."""
    B, G = x.shape[0], x.shape[1]
    C, S, L = I_i.shape[1], I_i.shape[-2], I_i.shape[-1]
    x2 = x.reshape(B, G).astype(jnp.float32)
    idx = jnp.asarray(I_i).reshape(-1).astype(jnp.int32)
    inv_gamma = 1.0 / gamma
    g = x2[:, idx]                                   # torch.gather (B, C*S*L)
    prod = (-gamma) * ((-g) * inv_gamma)             # softand over size-1 dim 3
    gmin = prod.min()
    prod = jnp.where(gmin < 0.0, prod - gmin, prod)
    c = gamma * (prod * inv_gamma)                   # softor over size-1 dim 2
    gmax = c.max()
    c = jnp.where(gmax > 1.0, c / gmax, c)
    return c.reshape(B, C, S, L)


if __name__ == "__main__":
    key = jax.random.PRNGKey(0)
    kx, ki, kx2, ki2 = jax.random.split(key, 4)

    # Small shapes consistent with the module: B=2 batch, G=24 ground atoms,
    # C=4 clauses, S=6 substitutions, L=3 body atoms, spatial = 1x1.
    B, G, C, S, L = 2, 24, 4, 6, 3
    gamma = 0.001

    x = jax.random.uniform(kx, (B, G, 1, 1), dtype=jnp.float32,
                           minval=-0.25, maxval=1.25)
    I_i = jax.random.randint(ki, (1, C, 1, 1, S, L), 0, G, dtype=jnp.int32)

    fwd = jax.jit(make_area_function(I_i, num_atoms=G, gamma=gamma))
    out = jax.block_until_ready(fwd(x))
    ref = area_function_ref(x, I_i, gamma=gamma)
    assert out.shape == (B, C, S, L)
    np.testing.assert_allclose(np.asarray(out), np.asarray(ref),
                               rtol=1e-5, atol=1e-6)

    # Second (still small) case with a multi-block P grid and padded P,
    # exercising the tiled weight-stationary path: P = 8*16*3 = 384 -> 2 tiles.
    B2, G2, C2, S2, L2 = 10, 24, 8, 16, 3
    x2 = jax.random.uniform(kx2, (B2, G2, 1, 1), dtype=jnp.float32,
                            minval=-0.5, maxval=1.5)
    I_i2 = jax.random.randint(ki2, (1, C2, 1, 1, S2, L2), 0, G2, dtype=jnp.int32)
    fwd2 = jax.jit(make_area_function(I_i2, num_atoms=G2, gamma=gamma))
    out2 = jax.block_until_ready(fwd2(x2))
    ref2 = area_function_ref(x2, I_i2, gamma=gamma)
    assert out2.shape == (B2, C2, S2, L2)
    np.testing.assert_allclose(np.asarray(out2), np.asarray(ref2),
                               rtol=1e-5, atol=1e-6)

    print("KERNEL_OK")
</pallas_src>

<mosaic_0001>
module attributes {stable_mosaic.version = 11 : i64} {
  func.func @_gather_matmul_kernel(%arg0: i32, %arg1: i32, %arg2: memref<2x24xf32, #tpu.memory_space<vmem>>, %arg3: memref<24x128xbf16, #tpu.memory_space<vmem>>, %arg4: memref<2x128xf32, #tpu.memory_space<vmem>>) attributes {dimension_semantics = [#tpu.dimension_semantics<parallel>, #tpu.dimension_semantics<parallel>], iteration_bounds = array<i64: 1, 1>, scalar_prefetch = 0 : i64, scratch_operands = 0 : i64, tpu.core_type = #tpu.core_type<tc>, window_params = [{transform_indices = @transform_0, window_bounds = array<i64: 2, 24>}, {transform_indices = @transform_1, window_bounds = array<i64: 24, 128>}, {transform_indices = @transform_2, window_bounds = array<i64: 2, 128>}]} {
    %c0 = arith.constant 0 : index
    %c0_0 = arith.constant 0 : index
    %0 = vector.load %arg2[%c0, %c0_0] : memref<2x24xf32, #tpu.memory_space<vmem>>, vector<2x24xf32>
    %1 = arith.truncf %0 : vector<2x24xf32> to vector<2x24xbf16>
    %2 = arith.extf %1 : vector<2x24xbf16> to vector<2x24xf32>
    %3 = arith.subf %0, %2 : vector<2x24xf32>
    %4 = arith.truncf %3 : vector<2x24xf32> to vector<2x24xbf16>
    %5 = arith.extf %4 : vector<2x24xbf16> to vector<2x24xf32>
    %6 = arith.subf %3, %5 : vector<2x24xf32>
    %7 = arith.truncf %6 : vector<2x24xf32> to vector<2x24xbf16>
    %c0_1 = arith.constant 0 : index
    %c0_2 = arith.constant 0 : index
    %8 = vector.load %arg3[%c0_1, %c0_2] : memref<24x128xbf16, #tpu.memory_space<vmem>>, vector<24x128xbf16>
    %cst = arith.constant dense<0.000000e+00> : vector<2x128xf32>
    %9 = tpu.matmul %1, %8, %cst {dimension_numbers = #tpu.dot_dimension_numbers<[1], [0], [0], [1], [0, 0, 1, 1], [], []>} : vector<2x24xbf16>, vector<24x128xbf16>, vector<2x128xf32> -> vector<2x128xf32>
    %cst_3 = arith.constant dense<0.000000e+00> : vector<2x128xf32>
    %10 = tpu.matmul %4, %8, %cst_3 {dimension_numbers = #tpu.dot_dimension_numbers<[1], [0], [0], [1], [0, 0, 1, 1], [], []>} : vector<2x24xbf16>, vector<24x128xbf16>, vector<2x128xf32> -> vector<2x128xf32>
    %11 = arith.addf %9, %10 : vector<2x128xf32>
    %cst_4 = arith.constant dense<0.000000e+00> : vector<2x128xf32>
    %12 = tpu.matmul %7, %8, %cst_4 {dimension_numbers = #tpu.dot_dimension_numbers<[1], [0], [0], [1], [0, 0, 1, 1], [], []>} : vector<2x24xbf16>, vector<24x128xbf16>, vector<2x128xf32> -> vector<2x128xf32>
    %13 = arith.addf %11, %12 : vector<2x128xf32>
    %c0_5 = arith.constant 0 : index
    %c0_6 = arith.constant 0 : index
    %14 = vector.load %arg4[%c0_5, %c0_6] : memref<2x128xf32, #tpu.memory_space<vmem>>, vector<2x128xf32>
    tpu.vector_store %arg4[%c0_5, %c0_6], %13 {strides = array<i32>} : memref<2x128xf32, #tpu.memory_space<vmem>>, vector<2x128xf32>,
    return
  }
  func.func @transform_0(%arg0: i32, %arg1: i32) -> (i32, i32) {
    %c0_i32 = arith.constant 0 : i32
    %c0_i32_0 = arith.constant 0 : i32
    return %arg1, %c0_i32 : i32, i32
  }
  func.func @transform_1(%arg0: i32, %arg1: i32) -> (i32, i32) {
    %c0_i32 = arith.constant 0 : i32
    %c0_i32_0 = arith.constant 0 : i32
    return %c0_i32, %arg0 : i32, i32
  }
  func.func @transform_2(%arg0: i32, %arg1: i32) -> (i32, i32) {
    %c0_i32 = arith.constant 0 : i32
    return %arg1, %arg0 : i32, i32
  }
}

</mosaic_0001>

<llo_original>
// kernel: forward.1
$region0: #{forward.1}
  #allocation0 [shape = 'u32[]', space=smem, size = 0x4, offset = 0x4, fixed_abs, tag = 'smem constant byte address 0x4 - core index']
  #allocation1 [shape = 'u32[144,128]{1,0:T(1,128)}', space=vmem, size = 0x12000, scoped, tag = 'internal scratch']
  %s0 = inlined_call_operand.vmem [shape: f32[2,24], index: 0, kind: input, shape index: {}]
  %s1 = inlined_call_operand.vmem [shape: bf16[24,128], index: 1, kind: input, shape index: {}]
  %s2 = inlined_call_operand.vmem [shape: f32[2,128], index: 2, kind: output, shape index: {}]
  %s3 = sld [smem:[#allocation0]]
  $region18: #{forward.1} parent=0
    _
  %s5 = ssub.s32 1, %s3
  %s6 = scalar_select 0, %s5, %s3
  // Predicated region
  $region2: #{forward.1} parent=0 // pred_check
    _
  $region3: #{forward.1} parent=0 // pred_check_branch
    %8 = sbr.rel (0) target = $region5
  $region4: #{forward.1} parent=0 // pred_region
    _
  $region5: #{forward.1} parent=0 // pred_fallthru
    _
  // Predicated region
  $region6: #{forward.1} parent=0 // pred_check
    _
  $region7: #{forward.1} parent=0 // pred_check_branch
    %10 = sbr.rel (0) target = $region9
  $region8: #{forward.1} parent=0 // pred_region
    _
  $region9: #{forward.1} parent=0 // pred_fallthru
    _
  %v12 = vld [vmem:[%s0] sm:$0x3]
  %v13 = vpack.c.bf16 %v12, %v12
  %v14 = vunpack.c.l.bf16 %v13
  %v15 = vsub.f32 %v12, %v14
  %v16 = vpack.c.bf16 %v15, %v15
  %v17 = vunpack.c.l.bf16 %v16
  %v18 = vsub.f32 %v15, %v17
  %v19 = vpack.c.bf16 %v18, %v18
  %v20 = vld [vmem:[%s1] sm:$0xf]
  %v21 = vld [vmem:[%s1 + $0x4] sm:$0xf]
  %v22 = vld [vmem:[%s1 + $0x8] sm:$0xf]
  %v26 = vunpack.c.l.b16 %v20
  %v27 = vunpack.c.l.b16 %v21
  %v28 = vunpack.c.l.b16 %v22
  %v29 = vpack.c.b16 %v27, %v26
  %v30 = vpack.c.b16 %v28, %v28
  %vm32 = vcmask 195584
  %v34 = vsel %vm32, %v16, 0
  %vm36 = vcmask 1043456
  %v38 = vsel %vm36, %v30, 0
  %40 = vmatprep.subr.bf16.mxu0 0
  %41 = vmatpush1.bf16.msra.mxu0 0
  %42 = vmatprep.subr.bf16.mxu0 0
  %43 = vmatpush1.bf16.msra.mxu0 0
  %44 = vmatprep.subr.bf16.mxu0 0
  %45 = vmatpush1.bf16.msra.mxu0 0
  %46 = vmatprep.subr.bf16.mxu0 0
  %47 = vmatpush1.bf16.msra.mxu0 0
  %48 = vmatprep.subr.bf16.mxu0 0
  %49 = vmatpush1.bf16.msra.mxu0 0
  %50 = vmatprep.subr.bf16.mxu0 0
  %51 = vmatpush1.bf16.msra.mxu0 0
  %52 = vmatprep.subr.bf16.mxu0 0
  %53 = vmatpush1.bf16.msra.mxu0 %v38
  %54 = vmatprep.subr.bf16.mxu0 0
  %55 = vmatpush1.bf16.msra.mxu0 %v29
  %56 = vmatprep.subr.bf16.mxu0 0
  %57 = vmatpush2.bf16.msra.mxu0 0
  %58 = vmatprep.subr.bf16.mxu0 0
  %59 = vmatpush2.bf16.msra.mxu0 0
  %60 = vmatprep.subr.bf16.mxu0 0
  %61 = vmatpush2.bf16.msra.mxu0 0
  %62 = vmatprep.subr.bf16.mxu0 0
  %63 = vmatpush2.bf16.msra.mxu0 0
  %64 = vmatprep.subr.bf16.mxu0 0
  %65 = vmatpush2.bf16.msra.mxu0 0
  %66 = vmatprep.subr.bf16.mxu0 0
  %67 = vmatpush2.bf16.msra.mxu0 0
  %68 = vmatprep.subr.bf16.mxu0 0
  %69 = vmatpush2.bf16.msra.mxu0 0
  %70 = vmatprep.subr.bf16.mxu0 0
  %71 = vmatpush2.bf16.msra.mxu0 0
  %72 = vmatprep.mubr.bf16.mxu0 0
  %73 = vmatmul.mubr.bf16.gmra.mxu0 %v34
  %v74 = vpop.f32.mrf.mxu0
  %v75 = vadd.f32 0.0, %v74
  %v76 = vpop.f32.mrf.mxu0
  %v77 = vpop.f32.mrf.mxu0
  %v78 = vpop.f32.mrf.mxu0
  %79 = vdwg.mxu0
  %v81 = vsel %vm32, %v13, 0
  %83 = vmatprep.subr.bf16.mxu0 0
  %84 = vmatpush1.bf16.msra.mxu0 0
  %85 = vmatprep.subr.bf16.mxu0 0
  %86 = vmatpush1.bf16.msra.mxu0 0
  %87 = vmatprep.subr.bf16.mxu0 0
  %88 = vmatpush1.bf16.msra.mxu0 0
  %89 = vmatprep.subr.bf16.mxu0 0
  %90 = vmatpush1.bf16.msra.mxu0 0
  %91 = vmatprep.subr.bf16.mxu0 0
  %92 = vmatpush1.bf16.msra.mxu0 0
  %93 = vmatprep.subr.bf16.mxu0 0
  %94 = vmatpush1.bf16.msra.mxu0 0
  %95 = vmatprep.subr.bf16.mxu0 0
  %96 = vmatpush1.bf16.msra.mxu0 %v38
  %97 = vmatprep.subr.bf16.mxu0 0
  %98 = vmatpush1.bf16.msra.mxu0 %v29
  %99 = vmatprep.subr.bf16.mxu0 0
  %100 = vmatpush2.bf16.msra.mxu0 0
  %101 = vmatprep.subr.bf16.mxu0 0
  %102 = vmatpush2.bf16.msra.mxu0 0
  %103 = vmatprep.subr.bf16.mxu0 0
  %104 = vmatpush2.bf16.msra.mxu0 0
  %105 = vmatprep.subr.bf16.mxu0 0
  %106 = vmatpush2.bf16.msra.mxu0 0
  %107 = vmatprep.subr.bf16.mxu0 0
  %108 = vmatpush2.bf16.msra.mxu0 0
  %109 = vmatprep.subr.bf16.mxu0 0
  %110 = vmatpush2.bf16.msra.mxu0 0
  %111 = vmatprep.subr.bf16.mxu0 0
  %112 = vmatpush2.bf16.msra.mxu0 0
  %113 = vmatprep.subr.bf16.mxu0 0
  %114 = vmatpush2.bf16.msra.mxu0 0
  %115 = vmatprep.mubr.bf16.mxu0 0
  %116 = vmatmul.mubr.bf16.gmra.mxu0 %v81
  %v117 = vpop.f32.mrf.mxu0
  %v118 = vadd.f32 %v75, %v117
  %v119 = vpop.f32.mrf.mxu0
  %v120 = vpop.f32.mrf.mxu0
  %v121 = vpop.f32.mrf.mxu0
  %122 = vdwg.mxu0
  %v124 = vsel %vm32, %v19, 0
  %126 = vmatprep.subr.bf16.mxu0 0
  %127 = vmatpush1.bf16.msra.mxu0 0
  %128 = vmatprep.subr.bf16.mxu0 0
  %129 = vmatpush1.bf16.msra.mxu0 0
  %130 = vmatprep.subr.bf16.mxu0 0
  %131 = vmatpush1.bf16.msra.mxu0 0
  %132 = vmatprep.subr.bf16.mxu0 0
  %133 = vmatpush1.bf16.msra.mxu0 0
  %134 = vmatprep.subr.bf16.mxu0 0
  %135 = vmatpush1.bf16.msra.mxu0 0
  %136 = vmatprep.subr.bf16.mxu0 0
  %137 = vmatpush1.bf16.msra.mxu0 0
  %138 = vmatprep.subr.bf16.mxu0 0
  %139 = vmatpush1.bf16.msra.mxu0 %v38
  %140 = vmatprep.subr.bf16.mxu0 0
  %141 = vmatpush1.bf16.msra.mxu0 %v29
  %142 = vmatprep.subr.bf16.mxu0 0
  %143 = vmatpush2.bf16.msra.mxu0 0
  %144 = vmatprep.subr.bf16.mxu0 0
  %145 = vmatpush2.bf16.msra.mxu0 0
  %146 = vmatprep.subr.bf16.mxu0 0
  %147 = vmatpush2.bf16.msra.mxu0 0
  %148 = vmatprep.subr.bf16.mxu0 0
  %149 = vmatpush2.bf16.msra.mxu0 0
  %150 = vmatprep.subr.bf16.mxu0 0
  %151 = vmatpush2.bf16.msra.mxu0 0
  %152 = vmatprep.subr.bf16.mxu0 0
  %153 = vmatpush2.bf16.msra.mxu0 0
  %154 = vmatprep.subr.bf16.mxu0 0
  %155 = vmatpush2.bf16.msra.mxu0 0
  %156 = vmatprep.subr.bf16.mxu0 0
  %157 = vmatpush2.bf16.msra.mxu0 0
  %158 = vmatprep.mubr.bf16.mxu0 0
  %159 = vmatmul.mubr.bf16.gmra.mxu0 %v124
  %v160 = vpop.f32.mrf.mxu0
  %v161 = vadd.f32 0.0, %v160
  %v162 = vpop.f32.mrf.mxu0
  %v163 = vpop.f32.mrf.mxu0
  %v164 = vpop.f32.mrf.mxu0
  %165 = vdwg.mxu0
  %v166 = vadd.f32 %v118, %v161
  %167 = vst [vmem:[%s2] sm:$0x3] %v166
  // Predicated region
  $region10: #{forward.1} parent=0 // pred_check
    _
  $region11: #{forward.1} parent=0 // pred_check_branch
    %169 = sbr.rel (0) target = $region13
  $region12: #{forward.1} parent=0 // pred_region
    _
  $region13: #{forward.1} parent=0 // pred_fallthru
    _
  // Predicated region
  $region14: #{forward.1} parent=0 // pred_check
    _
  $region15: #{forward.1} parent=0 // pred_check_branch
    %171 = sbr.rel (0) target = $region17
  $region16: #{forward.1} parent=0 // pred_region
    _
  $region17: #{forward.1} parent=0 // pred_fallthru
    _

</llo_original>
